<compile_context>
chip_gen: v7x
topology: tpu7x:2x2x1
jax: 0.10.0
libtpu: 0.0.40
codegen_flags: <defaults>
</compile_context>

<pallas_src>
import functools

import jax
import jax.numpy as jnp
from jax.experimental import pallas as pl
from jax.experimental.pallas import tpu as pltpu


def resblock_pallas(x_nct, mask_n1t, weights, biases, dilations, kernel_size, slope):
    """Fused Pallas ResBlock forward.

    x_nct:    (B, C, T)  -- same convention as the PyTorch module
    mask_n1t: (B, 1, T)
    weights:  list of (C_out, C_in, K) arrays (PyTorch Conv1d layout)
    biases:   list of (C,) arrays
    """
    B, C, T = x_nct.shape
    K = int(kernel_size)
    dils = [int(d) for d in dilations]
    L = len(dils)
    pads = [(K - 1) * d // 2 for d in dils]
    pad_max = max(pads)
    Tpad = T + 2 * pad_max

    # Stack the (tiny) per-layer parameters once so a single resident input
    # covers every layer:  (L*K, C_out, C_in) and (L, C, 1).
    w_all = jnp.stack(
        [jnp.transpose(w, (2, 0, 1))[k] for w in weights for k in range(K)]
    ).astype(jnp.float32)                                   # (L*K, C_out, C_in)
    b_all = jnp.stack(biases).astype(jnp.float32)[:, :, None]   # (L, C, 1)

    def kernel(x_ref, m_ref, w_ref, b_ref, o_ref, xpad_ref):
        # x_ref: (1, C, T)   m_ref: (1, 1, T)   w_ref: (L*K, C, C)
        # b_ref: (L, C, 1)   o_ref: (1, C, T)   xpad_ref: (C, Tpad) scratch
        mrow = m_ref[0]                                     # (1, T)

        # Zero the halo once; leaky_relu(0) == 0 so it remains a valid stand-in
        # for PyTorch's per-layer Conv1d zero padding for every dilation.
        xpad_ref[...] = jnp.zeros_like(xpad_ref)
        xpad_ref[:, pad_max:pad_max + T] = x_ref[0].astype(jnp.float32)

        x_new = None
        for l in range(L):                                  # static layer loop
            d = dils[l]
            pad_l = pads[l]
            x_full = xpad_ref[...]                          # (C, Tpad) current x
            xr = jnp.where(x_full >= 0, x_full, slope * x_full)   # LeakyReLU (VPU)
            acc = jnp.zeros((C, T), jnp.float32) + b_ref[l]       # bias broadcast
            for k in range(K):                              # static tap loop
                off = pad_max - pad_l + k * d               # static lane offset
                acc = acc + jnp.dot(
                    w_ref[l * K + k], xr[:, off:off + T],
                    preferred_element_type=jnp.float32)
            # Residual uses the pre-activation x, read straight from the
            # resident tile (no duplicated x input).
            x_new = x_full[:, pad_max:pad_max + T] + acc * mrow
            if l + 1 < L:
                xpad_ref[:, pad_max:pad_max + T] = x_new    # feed next layer

        o_ref[0] = (x_new * mrow).astype(o_ref.dtype)       # fused final mask

    # Rough VMEM budget: double-buffered x/mask/out tiles + resident params and
    # padded scratch.  Raise the scoped limit when needed, capped at 64 MiB so
    # it stays legal on v7x (64 MiB VMEM) as well as v5e/v6e (128 MiB).
    bytes_per_step = 4 * (C * T + T + C * T) * 2
    bytes_const = 4 * (L * K * C * C + L * C + C * Tpad)
    vmem_limit = int(min(64 * 1024 * 1024,
                         max(32 * 1024 * 1024,
                             2 * (bytes_per_step + bytes_const))))

    return pl.pallas_call(
        kernel,
        out_shape=jax.ShapeDtypeStruct((B, C, T), x_nct.dtype),
        grid=(B,),
        in_specs=[
            pl.BlockSpec((1, C, T), lambda b: (b, 0, 0)),        # x
            pl.BlockSpec((1, 1, T), lambda b: (b, 0, 0)),        # mask
            pl.BlockSpec((L * K, C, C), lambda b: (0, 0, 0)),    # all weights
            pl.BlockSpec((L, C, 1), lambda b: (0, 0, 0)),        # all biases
        ],
        out_specs=pl.BlockSpec((1, C, T), lambda b: (b, 0, 0)),
        scratch_shapes=[pltpu.VMEM((C, Tpad), jnp.float32)],
        compiler_params=pltpu.CompilerParams(
            dimension_semantics=("parallel",),
            vmem_limit_bytes=vmem_limit),
    )(x_nct, mask_n1t, w_all, b_all)


def resblock_reference(x_nct, mask_n1t, weights, biases, dilations, kernel_size, slope):
    """Pure-JAX reference matching the PyTorch forward exactly."""
    x = x_nct
    for w, b, d in zip(weights, biases, dilations):
        xr = jnp.where(x >= 0, x, slope * x)
        pad = (kernel_size - 1) * int(d) // 2
        y = jax.lax.conv_general_dilated(
            xr, w, window_strides=(1,), padding=[(pad, pad)],
            rhs_dilation=(int(d),),
            dimension_numbers=("NCH", "OIH", "NCH"))
        y = y + b[None, :, None]
        x = x + y * mask_n1t
    return x * mask_n1t


if __name__ == "__main__":
    # Module config (small, matches ResBlock.__init__ shapes).
    kernel_size = 3
    dilation_rates = [[1, 2], [4]]
    channel = 4
    slope = 0.1

    B, C, T = 2, channel, 16
    dilations = [d for row in dilation_rates for d in row]

    key = jax.random.PRNGKey(0)
    # Deterministic parameter init mimicking PyTorch Conv1d default (uniform).
    weights, biases = [], []
    bound = 1.0 / (channel * kernel_size) ** 0.5
    for _ in range(len(dilations)):
        key, kw, kb = jax.random.split(key, 3)
        weights.append(jax.random.uniform(
            kw, (channel, channel, kernel_size), jnp.float32, -bound, bound))
        biases.append(jax.random.uniform(
            kb, (channel,), jnp.float32, -bound, bound))

    key, kx = jax.random.split(key)
    x = jax.random.normal(kx, (B, C, T), jnp.float32)
    # Length-style mask: (B, 1, T), batch 0 fully valid, batch 1 valid for 10 steps.
    lengths = jnp.array([T, 10])
    mask = (jnp.arange(T)[None, :] < lengths[:, None]).astype(jnp.float32)[:, None, :]

    run = jax.jit(functools.partial(
        resblock_pallas, weights=weights, biases=biases,
        dilations=dilations, kernel_size=kernel_size, slope=slope))
    out = jax.block_until_ready(run(x, mask))

    ref = resblock_reference(x, mask, weights, biases, dilations, kernel_size, slope)
    assert out.shape == (B, C, T)
    assert jnp.allclose(out, ref, atol=1e-5, rtol=1e-5), "mismatch vs reference"

    print("KERNEL_OK")
</pallas_src>

<mosaic_0001>
module attributes {stable_mosaic.version = 11 : i64} {
  func.func @kernel(%arg0: i32, %arg1: memref<1x4x16xf32, #tpu.memory_space<vmem>>, %arg2: memref<1x1x16xf32, #tpu.memory_space<vmem>>, %arg3: memref<9x4x4xf32, #tpu.memory_space<vmem>>, %arg4: memref<3x4x1xf32, #tpu.memory_space<vmem>>, %arg5: memref<1x4x16xf32, #tpu.memory_space<vmem>>, %arg6: memref<4x24xf32, #tpu.memory_space<vmem>>) attributes {dimension_semantics = [#tpu.dimension_semantics<parallel>], iteration_bounds = array<i64: 2>, scalar_prefetch = 0 : i64, scratch_operands = 1 : i64, tpu.core_type = #tpu.core_type<tc>, window_params = [{transform_indices = @transform_0, window_bounds = array<i64: 1, 4, 16>}, {transform_indices = @transform_1, window_bounds = array<i64: 1, 1, 16>}, {pipeline_mode = #tpu.pipeline_mode<synchronous>, transform_indices = @transform_2, window_bounds = array<i64: 9, 4, 4>}, {pipeline_mode = #tpu.pipeline_mode<synchronous>, transform_indices = @transform_3, window_bounds = array<i64: 3, 4, 1>}, {transform_indices = @transform_4, window_bounds = array<i64: 1, 4, 16>}]} {
    %c0 = arith.constant 0 : index
    %c0_0 = arith.constant 0 : index
    %c0_1 = arith.constant 0 : index
    %0 = vector.load %arg2[%c0, %c0_0, %c0_1] : memref<1x1x16xf32, #tpu.memory_space<vmem>>, vector<1x1x16xf32>
    %1 = vector.shape_cast %0 : vector<1x1x16xf32> to vector<1x16xf32>
    %cst = arith.constant 0.000000e+00 : f32
    %2 = vector.broadcast %cst : f32 to vector<4x24xf32>
    %c0_2 = arith.constant 0 : index
    %c0_3 = arith.constant 0 : index
    %3 = vector.load %arg6[%c0_2, %c0_3] : memref<4x24xf32, #tpu.memory_space<vmem>>, vector<4x24xf32>
    tpu.vector_store %arg6[%c0_2, %c0_3], %2 {strides = array<i32>} : memref<4x24xf32, #tpu.memory_space<vmem>>, vector<4x24xf32>,
    %c0_4 = arith.constant 0 : index
    %c0_5 = arith.constant 0 : index
    %c0_6 = arith.constant 0 : index
    %4 = vector.load %arg1[%c0_4, %c0_5, %c0_6] : memref<1x4x16xf32, #tpu.memory_space<vmem>>, vector<1x4x16xf32>
    %5 = vector.shape_cast %4 : vector<1x4x16xf32> to vector<4x16xf32>
    %c0_7 = arith.constant 0 : index
    %c4 = arith.constant 4 : index
    %6 = vector.load %arg6[%c0_7, %c4] : memref<4x24xf32, #tpu.memory_space<vmem>>, vector<4x16xf32>
    tpu.vector_store %arg6[%c0_7, %c4], %5 {strides = array<i32>} : memref<4x24xf32, #tpu.memory_space<vmem>>, vector<4x16xf32>,
    %c0_8 = arith.constant 0 : index
    %c0_9 = arith.constant 0 : index
    %7 = vector.load %arg6[%c0_8, %c0_9] : memref<4x24xf32, #tpu.memory_space<vmem>>, vector<4x24xf32>
    %cst_10 = arith.constant 0.000000e+00 : f32
    %8 = vector.broadcast %cst_10 : f32 to vector<4x24xf32>
    %9 = arith.cmpf oge, %7, %8 : vector<4x24xf32>
    %cst_11 = arith.constant 1.000000e-01 : f32
    %10 = vector.broadcast %cst_11 : f32 to vector<4x24xf32>
    %11 = arith.mulf %10, %7 : vector<4x24xf32>
    %12 = arith.select %9, %7, %11 : vector<4x24xi1>, vector<4x24xf32>
    %cst_12 = arith.constant 0.000000e+00 : f32
    %13 = vector.broadcast %cst_12 : f32 to vector<4x16xf32>
    %c0_13 = arith.constant 0 : index
    %c0_14 = arith.constant 0 : index
    %c0_15 = arith.constant 0 : index
    %14 = vector.load %arg4[%c0_13, %c0_14, %c0_15] : memref<3x4x1xf32, #tpu.memory_space<vmem>>, vector<1x4x1xf32>
    %15 = vector.shape_cast %14 : vector<1x4x1xf32> to vector<4x1xf32>
    %16 = vector.broadcast %15 : vector<4x1xf32> to vector<4x16xf32>
    %17 = arith.addf %13, %16 : vector<4x16xf32>
    %c0_16 = arith.constant 0 : index
    %c0_17 = arith.constant 0 : index
    %c0_18 = arith.constant 0 : index
    %18 = vector.load %arg3[%c0_16, %c0_17, %c0_18] : memref<9x4x4xf32, #tpu.memory_space<vmem>>, vector<1x4x4xf32>
    %19 = vector.shape_cast %18 : vector<1x4x4xf32> to vector<4x4xf32>
    %20 = vector.extract_strided_slice %12 {offsets = [0, 3], sizes = [4, 16], strides = [1, 1]} : vector<4x24xf32> to vector<4x16xf32>
    %cst_19 = arith.constant dense<0.000000e+00> : vector<4x16xf32>
    %21 = tpu.matmul %19, %20, %cst_19 {dimension_numbers = #tpu.dot_dimension_numbers<[1], [0], [0], [1], [0, 0, 1, 1], [], []>} : vector<4x4xf32>, vector<4x16xf32>, vector<4x16xf32> -> vector<4x16xf32>
    %22 = arith.addf %17, %21 : vector<4x16xf32>
    %c1 = arith.constant 1 : index
    %c0_20 = arith.constant 0 : index
    %c0_21 = arith.constant 0 : index
    %23 = vector.load %arg3[%c1, %c0_20, %c0_21] : memref<9x4x4xf32, #tpu.memory_space<vmem>>, vector<1x4x4xf32>
    %24 = vector.shape_cast %23 : vector<1x4x4xf32> to vector<4x4xf32>
    %25 = vector.extract_strided_slice %12 {offsets = [0, 4], sizes = [4, 16], strides = [1, 1]} : vector<4x24xf32> to vector<4x16xf32>
    %cst_22 = arith.constant dense<0.000000e+00> : vector<4x16xf32>
    %26 = tpu.matmul %24, %25, %cst_22 {dimension_numbers = #tpu.dot_dimension_numbers<[1], [0], [0], [1], [0, 0, 1, 1], [], []>} : vector<4x4xf32>, vector<4x16xf32>, vector<4x16xf32> -> vector<4x16xf32>
    %27 = arith.addf %22, %26 : vector<4x16xf32>
    %c2 = arith.constant 2 : index
    %c0_23 = arith.constant 0 : index
    %c0_24 = arith.constant 0 : index
    %28 = vector.load %arg3[%c2, %c0_23, %c0_24] : memref<9x4x4xf32, #tpu.memory_space<vmem>>, vector<1x4x4xf32>
    %29 = vector.shape_cast %28 : vector<1x4x4xf32> to vector<4x4xf32>
    %30 = vector.extract_strided_slice %12 {offsets = [0, 5], sizes = [4, 16], strides = [1, 1]} : vector<4x24xf32> to vector<4x16xf32>
    %cst_25 = arith.constant dense<0.000000e+00> : vector<4x16xf32>
    %31 = tpu.matmul %29, %30, %cst_25 {dimension_numbers = #tpu.dot_dimension_numbers<[1], [0], [0], [1], [0, 0, 1, 1], [], []>} : vector<4x4xf32>, vector<4x16xf32>, vector<4x16xf32> -> vector<4x16xf32>
    %32 = arith.addf %27, %31 : vector<4x16xf32>
    %33 = vector.extract_strided_slice %7 {offsets = [0, 4], sizes = [4, 16], strides = [1, 1]} : vector<4x24xf32> to vector<4x16xf32>
    %34 = vector.broadcast %1 : vector<1x16xf32> to vector<4x16xf32>
    %35 = arith.mulf %32, %34 : vector<4x16xf32>
    %36 = arith.addf %33, %35 : vector<4x16xf32>
    %c0_26 = arith.constant 0 : index
    %c4_27 = arith.constant 4 : index
    %37 = vector.load %arg6[%c0_26, %c4_27] : memref<4x24xf32, #tpu.memory_space<vmem>>, vector<4x16xf32>
    tpu.vector_store %arg6[%c0_26, %c4_27], %36 {strides = array<i32>} : memref<4x24xf32, #tpu.memory_space<vmem>>, vector<4x16xf32>,
    %c0_28 = arith.constant 0 : index
    %c0_29 = arith.constant 0 : index
    %38 = vector.load %arg6[%c0_28, %c0_29] : memref<4x24xf32, #tpu.memory_space<vmem>>, vector<4x24xf32>
    %cst_30 = arith.constant 0.000000e+00 : f32
    %39 = vector.broadcast %cst_30 : f32 to vector<4x24xf32>
    %40 = arith.cmpf oge, %38, %39 : vector<4x24xf32>
    %cst_31 = arith.constant 1.000000e-01 : f32
    %41 = vector.broadcast %cst_31 : f32 to vector<4x24xf32>
    %42 = arith.mulf %41, %38 : vector<4x24xf32>
    %43 = arith.select %40, %38, %42 : vector<4x24xi1>, vector<4x24xf32>
    %cst_32 = arith.constant 0.000000e+00 : f32
    %44 = vector.broadcast %cst_32 : f32 to vector<4x16xf32>
    %c1_33 = arith.constant 1 : index
    %c0_34 = arith.constant 0 : index
    %c0_35 = arith.constant 0 : index
    %45 = vector.load %arg4[%c1_33, %c0_34, %c0_35] : memref<3x4x1xf32, #tpu.memory_space<vmem>>, vector<1x4x1xf32>
    %46 = vector.shape_cast %45 : vector<1x4x1xf32> to vector<4x1xf32>
    %47 = vector.broadcast %46 : vector<4x1xf32> to vector<4x16xf32>
    %48 = arith.addf %44, %47 : vector<4x16xf32>
    %c3 = arith.constant 3 : index
    %c0_36 = arith.constant 0 : index
    %c0_37 = arith.constant 0 : index
    %49 = vector.load %arg3[%c3, %c0_36, %c0_37] : memref<9x4x4xf32, #tpu.memory_space<vmem>>, vector<1x4x4xf32>
    %50 = vector.shape_cast %49 : vector<1x4x4xf32> to vector<4x4xf32>
    %51 = vector.extract_strided_slice %43 {offsets = [0, 2], sizes = [4, 16], strides = [1, 1]} : vector<4x24xf32> to vector<4x16xf32>
    %cst_38 = arith.constant dense<0.000000e+00> : vector<4x16xf32>
    %52 = tpu.matmul %50, %51, %cst_38 {dimension_numbers = #tpu.dot_dimension_numbers<[1], [0], [0], [1], [0, 0, 1, 1], [], []>} : vector<4x4xf32>, vector<4x16xf32>, vector<4x16xf32> -> vector<4x16xf32>
    %53 = arith.addf %48, %52 : vector<4x16xf32>
    %c4_39 = arith.constant 4 : index
    %c0_40 = arith.constant 0 : index
    %c0_41 = arith.constant 0 : index
    %54 = vector.load %arg3[%c4_39, %c0_40, %c0_41] : memref<9x4x4xf32, #tpu.memory_space<vmem>>, vector<1x4x4xf32>
    %55 = vector.shape_cast %54 : vector<1x4x4xf32> to vector<4x4xf32>
    %56 = vector.extract_strided_slice %43 {offsets = [0, 4], sizes = [4, 16], strides = [1, 1]} : vector<4x24xf32> to vector<4x16xf32>
    %cst_42 = arith.constant dense<0.000000e+00> : vector<4x16xf32>
    %57 = tpu.matmul %55, %56, %cst_42 {dimension_numbers = #tpu.dot_dimension_numbers<[1], [0], [0], [1], [0, 0, 1, 1], [], []>} : vector<4x4xf32>, vector<4x16xf32>, vector<4x16xf32> -> vector<4x16xf32>
    %58 = arith.addf %53, %57 : vector<4x16xf32>
    %c5 = arith.constant 5 : index
    %c0_43 = arith.constant 0 : index
    %c0_44 = arith.constant 0 : index
    %59 = vector.load %arg3[%c5, %c0_43, %c0_44] : memref<9x4x4xf32, #tpu.memory_space<vmem>>, vector<1x4x4xf32>
    %60 = vector.shape_cast %59 : vector<1x4x4xf32> to vector<4x4xf32>
    %61 = vector.extract_strided_slice %43 {offsets = [0, 6], sizes = [4, 16], strides = [1, 1]} : vector<4x24xf32> to vector<4x16xf32>
    %cst_45 = arith.constant dense<0.000000e+00> : vector<4x16xf32>
    %62 = tpu.matmul %60, %61, %cst_45 {dimension_numbers = #tpu.dot_dimension_numbers<[1], [0], [0], [1], [0, 0, 1, 1], [], []>} : vector<4x4xf32>, vector<4x16xf32>, vector<4x16xf32> -> vector<4x16xf32>
    %63 = arith.addf %58, %62 : vector<4x16xf32>
    %64 = vector.extract_strided_slice %38 {offsets = [0, 4], sizes = [4, 16], strides = [1, 1]} : vector<4x24xf32> to vector<4x16xf32>
    %65 = vector.broadcast %1 : vector<1x16xf32> to vector<4x16xf32>
    %66 = arith.mulf %63, %65 : vector<4x16xf32>
    %67 = arith.addf %64, %66 : vector<4x16xf32>
    %c0_46 = arith.constant 0 : index
    %c4_47 = arith.constant 4 : index
    %68 = vector.load %arg6[%c0_46, %c4_47] : memref<4x24xf32, #tpu.memory_space<vmem>>, vector<4x16xf32>
    tpu.vector_store %arg6[%c0_46, %c4_47], %67 {strides = array<i32>} : memref<4x24xf32, #tpu.memory_space<vmem>>, vector<4x16xf32>,
    %c0_48 = arith.constant 0 : index
    %c0_49 = arith.constant 0 : index
    %69 = vector.load %arg6[%c0_48, %c0_49] : memref<4x24xf32, #tpu.memory_space<vmem>>, vector<4x24xf32>
    %cst_50 = arith.constant 0.000000e+00 : f32
    %70 = vector.broadcast %cst_50 : f32 to vector<4x24xf32>
    %71 = arith.cmpf oge, %69, %70 : vector<4x24xf32>
    %cst_51 = arith.constant 1.000000e-01 : f32
    %72 = vector.broadcast %cst_51 : f32 to vector<4x24xf32>
    %73 = arith.mulf %72, %69 : vector<4x24xf32>
    %74 = arith.select %71, %69, %73 : vector<4x24xi1>, vector<4x24xf32>
    %cst_52 = arith.constant 0.000000e+00 : f32
    %75 = vector.broadcast %cst_52 : f32 to vector<4x16xf32>
    %c2_53 = arith.constant 2 : index
    %c0_54 = arith.constant 0 : index
    %c0_55 = arith.constant 0 : index
    %76 = vector.load %arg4[%c2_53, %c0_54, %c0_55] : memref<3x4x1xf32, #tpu.memory_space<vmem>>, vector<1x4x1xf32>
    %77 = vector.shape_cast %76 : vector<1x4x1xf32> to vector<4x1xf32>
    %78 = vector.broadcast %77 : vector<4x1xf32> to vector<4x16xf32>
    %79 = arith.addf %75, %78 : vector<4x16xf32>
    %c6 = arith.constant 6 : index
    %c0_56 = arith.constant 0 : index
    %c0_57 = arith.constant 0 : index
    %80 = vector.load %arg3[%c6, %c0_56, %c0_57] : memref<9x4x4xf32, #tpu.memory_space<vmem>>, vector<1x4x4xf32>
    %81 = vector.shape_cast %80 : vector<1x4x4xf32> to vector<4x4xf32>
    %82 = vector.extract_strided_slice %74 {offsets = [0, 0], sizes = [4, 16], strides = [1, 1]} : vector<4x24xf32> to vector<4x16xf32>
    %cst_58 = arith.constant dense<0.000000e+00> : vector<4x16xf32>
    %83 = tpu.matmul %81, %82, %cst_58 {dimension_numbers = #tpu.dot_dimension_numbers<[1], [0], [0], [1], [0, 0, 1, 1], [], []>} : vector<4x4xf32>, vector<4x16xf32>, vector<4x16xf32> -> vector<4x16xf32>
    %84 = arith.addf %79, %83 : vector<4x16xf32>
    %c7 = arith.constant 7 : index
    %c0_59 = arith.constant 0 : index
    %c0_60 = arith.constant 0 : index
    %85 = vector.load %arg3[%c7, %c0_59, %c0_60] : memref<9x4x4xf32, #tpu.memory_space<vmem>>, vector<1x4x4xf32>
    %86 = vector.shape_cast %85 : vector<1x4x4xf32> to vector<4x4xf32>
    %87 = vector.extract_strided_slice %74 {offsets = [0, 4], sizes = [4, 16], strides = [1, 1]} : vector<4x24xf32> to vector<4x16xf32>
    %cst_61 = arith.constant dense<0.000000e+00> : vector<4x16xf32>
    %88 = tpu.matmul %86, %87, %cst_61 {dimension_numbers = #tpu.dot_dimension_numbers<[1], [0], [0], [1], [0, 0, 1, 1], [], []>} : vector<4x4xf32>, vector<4x16xf32>, vector<4x16xf32> -> vector<4x16xf32>
    %89 = arith.addf %84, %88 : vector<4x16xf32>
    %c8 = arith.constant 8 : index
    %c0_62 = arith.constant 0 : index
    %c0_63 = arith.constant 0 : index
    %90 = vector.load %arg3[%c8, %c0_62, %c0_63] : memref<9x4x4xf32, #tpu.memory_space<vmem>>, vector<1x4x4xf32>
    %91 = vector.shape_cast %90 : vector<1x4x4xf32> to vector<4x4xf32>
    %92 = vector.extract_strided_slice %74 {offsets = [0, 8], sizes = [4, 16], strides = [1, 1]} : vector<4x24xf32> to vector<4x16xf32>
    %cst_64 = arith.constant dense<0.000000e+00> : vector<4x16xf32>
    %93 = tpu.matmul %91, %92, %cst_64 {dimension_numbers = #tpu.dot_dimension_numbers<[1], [0], [0], [1], [0, 0, 1, 1], [], []>} : vector<4x4xf32>, vector<4x16xf32>, vector<4x16xf32> -> vector<4x16xf32>
    %94 = arith.addf %89, %93 : vector<4x16xf32>
    %95 = vector.extract_strided_slice %69 {offsets = [0, 4], sizes = [4, 16], strides = [1, 1]} : vector<4x24xf32> to vector<4x16xf32>
    %96 = vector.broadcast %1 : vector<1x16xf32> to vector<4x16xf32>
    %97 = arith.mulf %94, %96 : vector<4x16xf32>
    %98 = arith.addf %95, %97 : vector<4x16xf32>
    %99 = vector.broadcast %1 : vector<1x16xf32> to vector<4x16xf32>
    %100 = arith.mulf %98, %99 : vector<4x16xf32>
    %c0_65 = arith.constant 0 : index
    %c0_66 = arith.constant 0 : index
    %c0_67 = arith.constant 0 : index
    %101 = vector.load %arg5[%c0_65, %c0_66, %c0_67] : memref<1x4x16xf32, #tpu.memory_space<vmem>>, vector<1x4x16xf32>
    %102 = vector.shape_cast %101 : vector<1x4x16xf32> to vector<4x16xf32>
    %103 = vector.shape_cast %100 : vector<4x16xf32> to vector<1x4x16xf32>
    tpu.vector_store %arg5[%c0_65, %c0_66, %c0_67], %103 {strides = array<i32>} : memref<1x4x16xf32, #tpu.memory_space<vmem>>, vector<1x4x16xf32>,
    return
  }
  func.func @transform_0(%arg0: i32) -> (i32, i32, i32) {
    %c0_i32 = arith.constant 0 : i32
    %c0_i32_0 = arith.constant 0 : i32
    %c0_i32_1 = arith.constant 0 : i32
    return %arg0, %c0_i32, %c0_i32_0 : i32, i32, i32
  }
  func.func @transform_1(%arg0: i32) -> (i32, i32, i32) {
    %c0_i32 = arith.constant 0 : i32
    %c0_i32_0 = arith.constant 0 : i32
    %c0_i32_1 = arith.constant 0 : i32
    return %arg0, %c0_i32, %c0_i32_0 : i32, i32, i32
  }
  func.func @transform_2(%arg0: i32) -> (i32, i32, i32) {
    %c0_i32 = arith.constant 0 : i32
    %c0_i32_0 = arith.constant 0 : i32
    %c0_i32_1 = arith.constant 0 : i32
    %c0_i32_2 = arith.constant 0 : i32
    return %c0_i32, %c0_i32_0, %c0_i32_1 : i32, i32, i32
  }
  func.func @transform_3(%arg0: i32) -> (i32, i32, i32) {
    %c0_i32 = arith.constant 0 : i32
    %c0_i32_0 = arith.constant 0 : i32
    %c0_i32_1 = arith.constant 0 : i32
    %c0_i32_2 = arith.constant 0 : i32
    return %c0_i32, %c0_i32_0, %c0_i32_1 : i32, i32, i32
  }
  func.func @transform_4(%arg0: i32) -> (i32, i32, i32) {
    %c0_i32 = arith.constant 0 : i32
    %c0_i32_0 = arith.constant 0 : i32
    %c0_i32_1 = arith.constant 0 : i32
    return %arg0, %c0_i32, %c0_i32_0 : i32, i32, i32
  }
}

</mosaic_0001>

<llo_original>
// kernel: resblock_pallas.1
$region0: #{resblock_pallas.1}
  #allocation0 [shape = 'u32[]', space=smem, size = 0x4, offset = 0x4, fixed_abs, tag = 'smem constant byte address 0x4 - core index']
  #allocation1 [shape = 'u32[144,128]{1,0:T(1,128)}', space=vmem, size = 0x12000, scoped, tag = 'internal scratch']
  #allocation2 [shape = 'f32[4,24]{1,0:T(4,128)}', space=vmem, size = 0x800, scoped, tag = 'scratch operand']
  %s0 = inlined_call_operand.hbm [shape: f32[2,4,16], index: 0, kind: input, shape index: {}]
  %s1 = inlined_call_operand.vmem [shape: f32[2,1,16], index: 1, kind: input, shape index: {}]
  %s2 = inlined_call_operand.hbm [shape: f32[9,4,4], index: 2, kind: input, shape index: {}]
  %s3 = inlined_call_operand.hbm [shape: f32[3,4,1], index: 3, kind: input, shape index: {}]
  %s4 = inlined_call_operand.hbm [shape: f32[2,4,16], index: 4, kind: output, shape index: {}]
  %s5 = sld [smem:[#allocation0]]
  $region61: #{resblock_pallas.1} parent=0
    _
  %s7 = ssub.s32 1, %s5
  %s8 = scalar_select 0, %s7, %s5
  $region1: #{resblock_pallas.1} parent=0
    #allocation3 [shape = 'u8[4096]{0}', space=vmem, size = 0x1000, scoped, tag = 'input window, operand 0']
    #allocation4 [shape = 's32[2]{0}', space=sflag, size = 0x8, scoped, tag = 'scoped memory for resblock_pallas.1']
    #allocation5 [shape = 's32[2]{0}', space=sflag, size = 0x8, scoped, tag = 'scoped memory for resblock_pallas.1']
    #allocation6 [shape = 'u8[18432]{0}', space=vmem, size = 0x4800, scoped, tag = 'input window, operand 2, single buffered']
    #allocation7 [shape = 's32[1]{0}', space=sflag, size = 0x4, scoped, tag = 'scoped memory for resblock_pallas.1']
    #allocation8 [shape = 'u8[6144]{0}', space=vmem, size = 0x1800, scoped, tag = 'input window, operand 3, single buffered']
    #allocation9 [shape = 'u8[4096]{0}', space=vmem, size = 0x1000, scoped, tag = 'output window, operand 0']
    %9 = vsyncpa [#allocation4], 0
    %s10 = scalar_lea.sflag [#allocation4], 1
    %11 = vsyncpa %s10, 0
    %12 = vsyncpa [#allocation7], 0
    %13 = vsyncpa [#allocation5], 0
    %s14 = scalar_lea.sflag [#allocation5], 1
    %15 = vsyncpa %s14, 0
    loop: start=0, step=1, limit=4
    $region2: #{resblock_pallas.1} parent=1 // loop_pre_header
      _
    $region3: #{resblock_pallas.1} parent=1 // loop_header
      %s17 = sphi 0, %s21
      %p18 = scmp.ge.s32.totalorder %s17, 4
      %s27 = sphi 0, %s29
      %s30 = sphi 0, %s27
      %s31 = sphi 0, %s30
      %s47 = sphi 0, %s31
      %s53 = sphi 0, %s55
      %s56 = sphi 0, %s53
      %s57 = sphi 0, %s56
      %s73 = sphi 0, %s57
      %s77 = sphi 0, %s77
      %s79 = sphi 0, %s77
      %s80 = sphi 0, %s79
      %s94 = sphi 0, %s80
      %s98 = sphi 0, %s98
      %s100 = sphi 0, %s98
      %s101 = sphi 0, %s100
      %s115 = sphi 0, %s101
      %s121 = sphi 0, %s123
      %s124 = sphi 0, %s121
      %s125 = sphi 0, %s124
      %s141 = sphi 0, %s125
    $region4: #{resblock_pallas.1} parent=1 // loop_header_branch
      %20 = sbr.rel (%p18) target = $region8
    $region5: #{resblock_pallas.1} parent=1 // loop_body
      %s22 = ssub.s32 %s17, 1
      %s23 = ssub.s32 %s17, 2
      %s24 = sadd.s32 %s17, 1
      %s25 = ssub.s32 %s17, %s24
      %p26 = scmp.eq.s32.totalorder %s25, 0
      %s28 = sadd.s32 %s27, 1
      %s29 = scalar_select %p26, %s27, %s28
      %p32 = pneg %p26
      %p33 = scmp.eq.s32.totalorder %s17, 1
      %p34 = por %p32, %p33
      %p35 = scmp.ne.s32.totalorder %s27, %s30
      %p36 = scmp.eq.s32.totalorder %s17, 0
      %p37 = por %p35, %p36
      %p38 = scmp.ne.s32.totalorder %s27, %s30
      %p39 = scmp.eq.s32.totalorder %s22, 1
      %p40 = por %p38, %p39
      %p41 = scmp.ne.s32.totalorder %s30, %s31
      %p42 = scmp.eq.s32.totalorder %s22, 0
      %p43 = por %p41, %p42
      %p44 = scmp.ne.s32.totalorder %s30, %s31
      %p45 = scmp.eq.s32.totalorder %s23, 1
      %p46 = por %p44, %p45
      %p48 = scmp.ne.s32.totalorder %s31, %s47
      %p49 = scmp.eq.s32.totalorder %s23, 0
      %p50 = por %p48, %p49
      %s51 = ssub.s32 %s17, %s24
      %p52 = scmp.eq.s32.totalorder %s51, 0
      %s54 = sadd.s32 %s53, 1
      %s55 = scalar_select %p52, %s53, %s54
      %p58 = pneg %p52
      %p59 = scmp.eq.s32.totalorder %s17, 1
      %p60 = por %p58, %p59
      %p61 = scmp.ne.s32.totalorder %s53, %s56
      %p62 = scmp.eq.s32.totalorder %s17, 0
      %p63 = por %p61, %p62
      %p64 = scmp.ne.s32.totalorder %s53, %s56
      %p65 = scmp.eq.s32.totalorder %s22, 1
      %p66 = por %p64, %p65
      %p67 = scmp.ne.s32.totalorder %s56, %s57
      %p68 = scmp.eq.s32.totalorder %s22, 0
      %p69 = por %p67, %p68
      %p70 = scmp.ne.s32.totalorder %s56, %s57
      %p71 = scmp.eq.s32.totalorder %s23, 1
      %p72 = por %p70, %p71
      %p74 = scmp.ne.s32.totalorder %s57, %s73
      %p75 = scmp.eq.s32.totalorder %s23, 0
      %p76 = por %p74, %p75
      %s78 = sadd.s32 %s77, 1
      %p81 = scmp.eq.s32.totalorder %s17, 1
      %p82 = scmp.ne.s32.totalorder %s77, %s79
      %p83 = scmp.eq.s32.totalorder %s17, 0
      %p84 = por %p82, %p83
      %p85 = scmp.ne.s32.totalorder %s77, %s79
      %p86 = scmp.eq.s32.totalorder %s22, 1
      %p87 = por %p85, %p86
      %p88 = scmp.ne.s32.totalorder %s79, %s80
      %p89 = scmp.eq.s32.totalorder %s22, 0
      %p90 = por %p88, %p89
      %p91 = scmp.ne.s32.totalorder %s79, %s80
      %p92 = scmp.eq.s32.totalorder %s23, 1
      %p93 = por %p91, %p92
      %p95 = scmp.ne.s32.totalorder %s80, %s94
      %p96 = scmp.eq.s32.totalorder %s23, 0
      %p97 = por %p95, %p96
      %s99 = sadd.s32 %s98, 1
      %p102 = scmp.eq.s32.totalorder %s17, 1
      %p103 = scmp.ne.s32.totalorder %s98, %s100
      %p104 = scmp.eq.s32.totalorder %s17, 0
      %p105 = por %p103, %p104
      %p106 = scmp.ne.s32.totalorder %s98, %s100
      %p107 = scmp.eq.s32.totalorder %s22, 1
      %p108 = por %p106, %p107
      %p109 = scmp.ne.s32.totalorder %s100, %s101
      %p110 = scmp.eq.s32.totalorder %s22, 0
      %p111 = por %p109, %p110
      %p112 = scmp.ne.s32.totalorder %s100, %s101
      %p113 = scmp.eq.s32.totalorder %s23, 1
      %p114 = por %p112, %p113
      %p116 = scmp.ne.s32.totalorder %s101, %s115
      %p117 = scmp.eq.s32.totalorder %s23, 0
      %p118 = por %p116, %p117
      %s119 = ssub.s32 %s17, %s24
      %p120 = scmp.eq.s32.totalorder %s119, 0
      %s122 = sadd.s32 %s121, 1
      %s123 = scalar_select %p120, %s121, %s122
      %p126 = pneg %p120
      %p127 = scmp.eq.s32.totalorder %s17, 1
      %p128 = por %p126, %p127
      %p129 = scmp.ne.s32.totalorder %s121, %s124
      %p130 = scmp.eq.s32.totalorder %s17, 0
      %p131 = por %p129, %p130
      %p132 = scmp.ne.s32.totalorder %s121, %s124
      %p133 = scmp.eq.s32.totalorder %s22, 1
      %p134 = por %p132, %p133
      %p135 = scmp.ne.s32.totalorder %s124, %s125
      %p136 = scmp.eq.s32.totalorder %s22, 0
      %p137 = por %p135, %p136
      %p138 = scmp.ne.s32.totalorder %s124, %s125
      %p139 = scmp.eq.s32.totalorder %s23, 1
      %p140 = por %p138, %p139
      %p142 = scmp.ne.s32.totalorder %s125, %s141
      %p143 = scmp.eq.s32.totalorder %s23, 0
      %p144 = por %p142, %p143
      %p145 = scmp.le.s32.totalorder 1, %s17
      %p146 = scmp.lt.s32.totalorder %s17, 3
      %p147 = pnand %p145, %p146
      %p148 = pneg %p147
      // Predicated region
      $region9: #{resblock_pallas.1} parent=5 // pred_check
        _
      $region10: #{resblock_pallas.1} parent=5 // pred_check_branch
        %150 = sbr.rel (%p147) target = $region12
      $region11: #{resblock_pallas.1} parent=5 // pred_region
        %s151 = ssub.s32 %s17, 1
        // Predicated region
        $region13: #{resblock_pallas.1} parent=11 // pred_check
          %p152 = pneg %p90
        $region14: #{resblock_pallas.1} parent=11 // pred_check_branch
          %154 = sbr.rel (%p152) target = $region16
        $region15: #{resblock_pallas.1} parent=11 // pred_region
          %s156 = ssub.s32 576, 576
          %157 = vsyncadd [#allocation7], %s156
          %s158 = sshll.u32 [#allocation6], 4
          %s159 = int_to_ptr.vmem [resolvable:$true] %s158
          %164 = dma.hbm_to_vmem [thread:$0]  %s2, 576, %s159, [#allocation7], 64, 64, 4
        $region16: #{resblock_pallas.1} parent=11 // pred_fallthru
          _
        // Predicated region
        $region17: #{resblock_pallas.1} parent=11 // pred_check
          %p165 = pneg %p111
        $region18: #{resblock_pallas.1} parent=11 // pred_check_branch
          %167 = sbr.rel (%p165) target = $region20
        $region19: #{resblock_pallas.1} parent=11 // pred_region
          %s169 = ssub.s32 192, 192
          %170 = vsyncadd [#allocation7], %s169
          %s171 = sshll.u32 [#allocation8], 4
          %s172 = int_to_ptr.vmem [resolvable:$true] %s171
          %177 = dma.hbm_to_vmem [thread:$0]  %s3, 192, %s172, [#allocation7], 64, 64, 4
        $region20: #{resblock_pallas.1} parent=11 // pred_fallthru
          _
      $region12: #{resblock_pallas.1} parent=5 // pred_fallthru
        _
      %p178 = scmp.lt.s32.totalorder %s17, 2
      // Predicated region
      $region21: #{resblock_pallas.1} parent=5 // pred_check
        %p179 = pneg %p178
      $region22: #{resblock_pallas.1} parent=5 // pred_check_branch
        %181 = sbr.rel (%p179) target = $region24
      $region23: #{resblock_pallas.1} parent=5 // pred_region
        // Predicated region
        $region25: #{resblock_pallas.1} parent=23 // pred_check
          %p182 = pneg %p37
        $region26: #{resblock_pallas.1} parent=23 // pred_check_branch
          %184 = sbr.rel (%p182) target = $region28
        $region27: #{resblock_pallas.1} parent=23 // pred_region
          %s185 = sand.u32 %s27, 1
          %s186 = scalar_lea.sflag [#allocation4], %s185
          %s187 = sand.u32 %s27, 1
          %s188 = smul.addr %s187, 4
          %s189 = scalar_lea.vmem [#allocation3], %s188
          %s191 = ssub.s32 64, 64
          %192 = vsyncadd %s186, %s191
          %s193 = smul.addr %s17, 64
          %s194 = scalar_lea.hbm %s0, %s193
          %s196 = sshll.u32 %s189, 4
          %s197 = int_to_ptr.vmem [resolvable:$true] %s196
          %199 = dma.hbm_to_vmem [thread:$0]  %s194, 64, %s197, %s186
        $region28: #{resblock_pallas.1} parent=23 // pred_fallthru
          _
        // Predicated region
        $region29: #{resblock_pallas.1} parent=23 // pred_check
          %p200 = pneg %p63
        $region30: #{resblock_pallas.1} parent=23 // pred_check_branch
          %202 = sbr.rel (%p200) target = $region32
        $region31: #{resblock_pallas.1} parent=23 // pred_region
          %p203 = scmp.lt.s32.totalorder %s17, 1
          %s204 = scalar_select %p203, %s17, 1
          %s205 = scalar_lea.vmem %s1, %s204
        $region32: #{resblock_pallas.1} parent=23 // pred_fallthru
          _
      $region24: #{resblock_pallas.1} parent=5 // pred_fallthru
        _
      %p206 = scmp.le.s32.totalorder 1, %s17
      %p207 = scmp.lt.s32.totalorder %s17, 3
      %p208 = pnand %p206, %p207
      %p209 = pneg %p208
      // Predicated region
      $region33: #{resblock_pallas.1} parent=5 // pred_check
        _
      $region34: #{resblock_pallas.1} parent=5 // pred_check_branch
        %211 = sbr.rel (%p208) target = $region36
      $region35: #{resblock_pallas.1} parent=5 // pred_region
        %s212 = ssub.s32 %s17, 1
        %s213 = sand.u32 %s30, 1
        %s214 = scalar_lea.sflag [#allocation4], %s213
        %s215 = sand.u32 %s30, 1
        %s216 = smul.addr %s215, 4
        %s217 = scalar_lea.vmem [#allocation3], %s216
        // Predicated region
        $region37: #{resblock_pallas.1} parent=35 // pred_check
          %p218 = pneg %p43
        $region38: #{resblock_pallas.1} parent=35 // pred_check_branch
          %220 = sbr.rel (%p218) target = $region40
        $region39: #{resblock_pallas.1} parent=35 // pred_region
          %221 = dma.done %s214, 64
        $region40: #{resblock_pallas.1} parent=35 // pred_fallthru
          _
        // Predicated region
        $region41: #{resblock_pallas.1} parent=35 // pred_check
          %p222 = pneg %p90
        $region42: #{resblock_pallas.1} parent=35 // pred_check_branch
          %224 = sbr.rel (%p222) target = $region44
        $region43: #{resblock_pallas.1} parent=35 // pred_region
          %225 = dma.done [#allocation7], 576
        $region44: #{resblock_pallas.1} parent=35 // pred_fallthru
          _
        // Predicated region
        $region45: #{resblock_pallas.1} parent=35 // pred_check
          %p226 = pneg %p111
        $region46: #{resblock_pallas.1} parent=35 // pred_check_branch
          %228 = sbr.rel (%p226) target = $region48
        $region47: #{resblock_pallas.1} parent=35 // pred_region
          %229 = dma.done [#allocation7], 192
        $region48: #{resblock_pallas.1} parent=35 // pred_fallthru
          _
        %s230 = sand.u32 %s30, 1
        %s231 = scalar_lea.sflag [#allocation4], %s230
        %s232 = sand.u32 %s30, 1
        %s233 = smul.addr %s232, 4
        %s234 = scalar_lea.vmem [#allocation3], %s233
        %p235 = pneg %p43
        %p236 = pneg %p40
        %p237 = scmp.lt.s32.totalorder %s22, 1
        %s238 = scalar_select %p237, %s22, 1
        %s239 = scalar_lea.vmem %s1, %s238
        %p240 = pneg %p69
        %p241 = pneg %p66
        %p242 = pneg %p90
        %p243 = pneg %p87
        %p244 = pneg %p111
        %p245 = pneg %p108
        %p246 = pneg %p137
        %p247 = pneg %p134
        %s248 = sand.u32 %s124, 1
        %s249 = scalar_lea.sflag [#allocation5], %s248
        %s250 = sand.u32 %s124, 1
        %s251 = smul.addr %s250, 4
        %s252 = scalar_lea.vmem [#allocation9], %s251
        %p253 = scmp.lt.s32.totalorder %s22, 1
        %s254 = scalar_select %p253, %s22, 1
        %s255 = scalar_lea.vmem %s1, %s254
        %v256 = vld [vmem:[%s255] sm:$0x1]
        %vm257 = vcmask 191488
        %258 = vst.msk [vmem:[#allocation2] sm:$0xf] %vm257, 0.0
        %v259 = vld [vmem:[%s217] sm:$0xf]
        %261 = vrot.lane.b32.xlu0 %v259, 4
        %v262 = vpop.permute.xlu0 %261
        %vm264 = vcmask 158752
        %265 = vst.msk [vmem:[#allocation2] sm:$0xf] %vm264, %v262
        %v266 = vld [vmem:[#allocation2] sm:$0xf]
        %vm267 = vcmp.ge.f32.partialorder %v266, 0.0
        %v268 = vmul.f32 %v266, 0.1
        %v269 = vsel %vm267, %v266, %v268
        %v270 = vld [vmem:[#allocation8] sm:$0xf]
        %272 = vset.pattern.permute.xlu0 0
        %273 = vperm.xlu0 %272, %v270
        %v274 = vpop.permute.xlu0 %273
        %v276 = vadd.f32 %v274, 0.0
        %v277 = vld [vmem:[#allocation6] sm:$0xf]
        %279 = vrot.lane.b32.xlu0 %v269, 125
        %v280 = vpop.permute.xlu0 %279
        %vm281 = vcmask 31744
        %v283 = vsel %vm281, %v277, 0
        %vm285 = vcmask 1043456
        %v286 = vsel %vm285, %v280, 0
        %288 = vmatprep.subr.mxu0 0.0
        %289 = vmatpush1.msra.mxu0 %v286
        %290 = vmatprep.subr.mxu0 0.0
        %291 = vmatpush1.msra.mxu0 0.0
        %292 = vmatprep.subr.mxu0 0.0
        %293 = vmatpush1.msra.mxu0 0.0
        %294 = vmatprep.subr.mxu0 0.0
        %295 = vmatpush1.msra.mxu0 0.0
        %296 = vmatprep.subr.mxu0 0.0
        %297 = vmatpush1.msra.mxu0 0.0
        %298 = vmatprep.subr.mxu0 0.0
        %299 = vmatpush1.msra.mxu0 0.0
        %300 = vmatprep.subr.mxu0 0.0
        %301 = vmatpush1.msra.mxu0 0.0
        %302 = vmatprep.subr.mxu0 0.0
        %303 = vmatpush1.msra.mxu0 0.0
        %304 = vmatprep.subr.mxu0 0.0
        %305 = vmatpush1.msra.mxu0 0.0
        %306 = vmatprep.subr.mxu0 0.0
        %307 = vmatpush1.msra.mxu0 0.0
        %308 = vmatprep.subr.mxu0 0.0
        %309 = vmatpush1.msra.mxu0 0.0
        %310 = vmatprep.subr.mxu0 0.0
        %311 = vmatpush1.msra.mxu0 0.0
        %312 = vmatprep.subr.mxu0 0.0
        %313 = vmatpush1.msra.mxu0 0.0
        %314 = vmatprep.subr.mxu0 0.0
        %315 = vmatpush1.msra.mxu0 0.0
        %316 = vmatprep.subr.mxu0 0.0
        %317 = vmatpush1.msra.mxu0 0.0
        %318 = vmatprep.subr.mxu0 0.0
        %319 = vmatpush1.msra.mxu0 0.0
        %320 = vmatprep.subr.mxu0 0.0
        %321 = vmatpush1.msra.mxu0 0.0
        %322 = vmatprep.subr.mxu0 0.0
        %323 = vmatpush1.msra.mxu0 0.0
        %324 = vmatprep.subr.mxu0 0.0
        %325 = vmatpush1.msra.mxu0 0.0
        %326 = vmatprep.subr.mxu0 0.0
        %327 = vmatpush1.msra.mxu0 0.0
        %328 = vmatprep.subr.mxu0 0.0
        %329 = vmatpush1.msra.mxu0 0.0
        %330 = vmatprep.subr.mxu0 0.0
        %331 = vmatpush1.msra.mxu0 0.0
        %332 = vmatprep.subr.mxu0 0.0
        %333 = vmatpush1.msra.mxu0 0.0
        %334 = vmatprep.subr.mxu0 0.0
        %335 = vmatpush1.msra.mxu0 0.0
        %336 = vmatprep.subr.mxu0 0.0
        %337 = vmatpush1.msra.mxu0 0.0
        %338 = vmatprep.subr.mxu0 0.0
        %339 = vmatpush1.msra.mxu0 0.0
        %340 = vmatprep.subr.mxu0 0.0
        %341 = vmatpush1.msra.mxu0 0.0
        %342 = vmatprep.subr.mxu0 0.0
        %343 = vmatpush1.msra.mxu0 0.0
        %344 = vmatprep.subr.mxu0 0.0
        %345 = vmatpush1.msra.mxu0 0.0
        %346 = vmatprep.subr.mxu0 0.0
        %347 = vmatpush1.msra.mxu0 0.0
        %348 = vmatprep.subr.mxu0 0.0
        %349 = vmatpush1.msra.mxu0 0.0
        %350 = vmatprep.subr.mxu0 0.0
        %351 = vmatpush1.msra.mxu0 0.0
        %352 = vmatprep.mubr.f32.mxu0 0.0
        %353 = vmatmul.mubr.f32.gmra.mrb[0].mxu0 %v283
        %v354 = vpop.f32.mrb[0].mxu0
        %v355 = vadd.f32 0.0, %v354
        %v356 = vpop.f32.mrb[0].mxu0
        %357 = vdwg.mxu0
        %v358 = vadd.f32 %v276, %v355
        %s359 = scalar_lea.vmem [#allocation6], 4
        %v360 = vld [vmem:[%s359] sm:$0xf]
        %361 = vrot.lane.b32.xlu0 %v269, 124
        %v362 = vpop.permute.xlu0 %361
        %v364 = vsel %vm281, %v360, 0
        %v366 = vsel %vm285, %v362, 0
        %368 = vmatprep.subr.mxu0 0.0
        %369 = vmatpush1.msra.mxu0 %v366
        %370 = vmatprep.subr.mxu0 0.0
        %371 = vmatpush1.msra.mxu0 0.0
        %372 = vmatprep.subr.mxu0 0.0
        %373 = vmatpush1.msra.mxu0 0.0
        %374 = vmatprep.subr.mxu0 0.0
        %375 = vmatpush1.msra.mxu0 0.0
        %376 = vmatprep.subr.mxu0 0.0
        %377 = vmatpush1.msra.mxu0 0.0
        %378 = vmatprep.subr.mxu0 0.0
        %379 = vmatpush1.msra.mxu0 0.0
        %380 = vmatprep.subr.mxu0 0.0
        %381 = vmatpush1.msra.mxu0 0.0
        %382 = vmatprep.subr.mxu0 0.0
        %383 = vmatpush1.msra.mxu0 0.0
        %384 = vmatprep.subr.mxu0 0.0
        %385 = vmatpush1.msra.mxu0 0.0
        %386 = vmatprep.subr.mxu0 0.0
        %387 = vmatpush1.msra.mxu0 0.0
        %388 = vmatprep.subr.mxu0 0.0
        %389 = vmatpush1.msra.mxu0 0.0
        %390 = vmatprep.subr.mxu0 0.0
        %391 = vmatpush1.msra.mxu0 0.0
        %392 = vmatprep.subr.mxu0 0.0
        %393 = vmatpush1.msra.mxu0 0.0
        %394 = vmatprep.subr.mxu0 0.0
        %395 = vmatpush1.msra.mxu0 0.0
        %396 = vmatprep.subr.mxu0 0.0
        %397 = vmatpush1.msra.mxu0 0.0
        %398 = vmatprep.subr.mxu0 0.0
        %399 = vmatpush1.msra.mxu0 0.0
        %400 = vmatprep.subr.mxu0 0.0
        %401 = vmatpush1.msra.mxu0 0.0
        %402 = vmatprep.subr.mxu0 0.0
        %403 = vmatpush1.msra.mxu0 0.0
        %404 = vmatprep.subr.mxu0 0.0
        %405 = vmatpush1.msra.mxu0 0.0
        %406 = vmatprep.subr.mxu0 0.0
        %407 = vmatpush1.msra.mxu0 0.0
        %408 = vmatprep.subr.mxu0 0.0
        %409 = vmatpush1.msra.mxu0 0.0
        %410 = vmatprep.subr.mxu0 0.0
        %411 = vmatpush1.msra.mxu0 0.0
        %412 = vmatprep.subr.mxu0 0.0
        %413 = vmatpush1.msra.mxu0 0.0
        %414 = vmatprep.subr.mxu0 0.0
        %415 = vmatpush1.msra.mxu0 0.0
        %416 = vmatprep.subr.mxu0 0.0
        %417 = vmatpush1.msra.mxu0 0.0
        %418 = vmatprep.subr.mxu0 0.0
        %419 = vmatpush1.msra.mxu0 0.0
        %420 = vmatprep.subr.mxu0 0.0
        %421 = vmatpush1.msra.mxu0 0.0
        %422 = vmatprep.subr.mxu0 0.0
        %423 = vmatpush1.msra.mxu0 0.0
        %424 = vmatprep.subr.mxu0 0.0
        %425 = vmatpush1.msra.mxu0 0.0
        %426 = vmatprep.subr.mxu0 0.0
        %427 = vmatpush1.msra.mxu0 0.0
        %428 = vmatprep.subr.mxu0 0.0
        %429 = vmatpush1.msra.mxu0 0.0
        %430 = vmatprep.subr.mxu0 0.0
        %431 = vmatpush1.msra.mxu0 0.0
        %432 = vmatprep.mubr.f32.mxu0 0.0
        %433 = vmatmul.mubr.f32.gmra.mrb[0].mxu0 %v364
        %v434 = vpop.f32.mrb[0].mxu0
        %v435 = vadd.f32 0.0, %v434
        %v436 = vpop.f32.mrb[0].mxu0
        %437 = vdwg.mxu0
        %v438 = vadd.f32 %v358, %v435
        %s439 = scalar_lea.vmem [#allocation6], 8
        %v440 = vld [vmem:[%s439] sm:$0xf]
        %441 = vrot.lane.b32.xlu0 %v269, 123
        %v442 = vpop.permute.xlu0 %441
        %v444 = vsel %vm281, %v440, 0
        %v446 = vsel %vm285, %v442, 0
        %448 = vmatprep.subr.mxu0 0.0
        %449 = vmatpush1.msra.mxu0 %v446
        %450 = vmatprep.subr.mxu0 0.0
        %451 = vmatpush1.msra.mxu0 0.0
        %452 = vmatprep.subr.mxu0 0.0
        %453 = vmatpush1.msra.mxu0 0.0
        %454 = vmatprep.subr.mxu0 0.0
        %455 = vmatpush1.msra.mxu0 0.0
        %456 = vmatprep.subr.mxu0 0.0
        %457 = vmatpush1.msra.mxu0 0.0
        %458 = vmatprep.subr.mxu0 0.0
        %459 = vmatpush1.msra.mxu0 0.0
        %460 = vmatprep.subr.mxu0 0.0
        %461 = vmatpush1.msra.mxu0 0.0
        %462 = vmatprep.subr.mxu0 0.0
        %463 = vmatpush1.msra.mxu0 0.0
        %464 = vmatprep.subr.mxu0 0.0
        %465 = vmatpush1.msra.mxu0 0.0
        %466 = vmatprep.subr.mxu0 0.0
        %467 = vmatpush1.msra.mxu0 0.0
        %468 = vmatprep.subr.mxu0 0.0
        %469 = vmatpush1.msra.mxu0 0.0
        %470 = vmatprep.subr.mxu0 0.0
        %471 = vmatpush1.msra.mxu0 0.0
        %472 = vmatprep.subr.mxu0 0.0
        %473 = vmatpush1.msra.mxu0 0.0
        %474 = vmatprep.subr.mxu0 0.0
        %475 = vmatpush1.msra.mxu0 0.0
        %476 = vmatprep.subr.mxu0 0.0
        %477 = vmatpush1.msra.mxu0 0.0
        %478 = vmatprep.subr.mxu0 0.0
        %479 = vmatpush1.msra.mxu0 0.0
        %480 = vmatprep.subr.mxu0 0.0
        %481 = vmatpush1.msra.mxu0 0.0
        %482 = vmatprep.subr.mxu0 0.0
        %483 = vmatpush1.msra.mxu0 0.0
        %484 = vmatprep.subr.mxu0 0.0
        %485 = vmatpush1.msra.mxu0 0.0
        %486 = vmatprep.subr.mxu0 0.0
        %487 = vmatpush1.msra.mxu0 0.0
        %488 = vmatprep.subr.mxu0 0.0
        %489 = vmatpush1.msra.mxu0 0.0
        %490 = vmatprep.subr.mxu0 0.0
        %491 = vmatpush1.msra.mxu0 0.0
        %492 = vmatprep.subr.mxu0 0.0
        %493 = vmatpush1.msra.mxu0 0.0
        %494 = vmatprep.subr.mxu0 0.0
        %495 = vmatpush1.msra.mxu0 0.0
        %496 = vmatprep.subr.mxu0 0.0
        %497 = vmatpush1.msra.mxu0 0.0
        %498 = vmatprep.subr.mxu0 0.0
        %499 = vmatpush1.msra.mxu0 0.0
        %500 = vmatprep.subr.mxu0 0.0
        %501 = vmatpush1.msra.mxu0 0.0
        %502 = vmatprep.subr.mxu0 0.0
        %503 = vmatpush1.msra.mxu0 0.0
        %504 = vmatprep.subr.mxu0 0.0
        %505 = vmatpush1.msra.mxu0 0.0
        %506 = vmatprep.subr.mxu0 0.0
        %507 = vmatpush1.msra.mxu0 0.0
        %508 = vmatprep.subr.mxu0 0.0
        %509 = vmatpush1.msra.mxu0 0.0
        %510 = vmatprep.subr.mxu0 0.0
        %511 = vmatpush1.msra.mxu0 0.0
        %512 = vmatprep.mubr.f32.mxu0 0.0
        %513 = vmatmul.mubr.f32.gmra.mrb[0].mxu0 %v444
        %v514 = vpop.f32.mrb[0].mxu0
        %v515 = vadd.f32 0.0, %v514
        %v516 = vpop.f32.mrb[0].mxu0
        %517 = vdwg.mxu0
        %v518 = vadd.f32 %v438, %v515
        %v520 = vlaneseq
        %v521 = vshrl.u32 %v520, 7
        %v522 = vsub.s32 0, %v521
        %v523 = vrot.slane %v256, %v522
        %v525 = vmul.f32 %v518, %v523
        %527 = vrot.lane.b32.xlu0 %v525, 4
        %v528 = vpop.permute.xlu0 %527
        %v530 = vadd.f32 %v266, %v528
        %531 = vst.msk [vmem:[#allocation2] sm:$0xf] %vm264, %v530
        %v532 = vld [vmem:[#allocation2] sm:$0xf]
        %vm533 = vcmp.ge.f32.partialorder %v532, 0.0
        %v534 = vmul.f32 %v532, 0.1
        %v535 = vsel %vm533, %v532, %v534
        %s536 = scalar_lea.vmem [#allocation8], 4
        %v537 = vld [vmem:[%s536] sm:$0xf]
        %539 = vset.pattern.permute.xlu0 0
        %540 = vperm.xlu0 %539, %v537
        %v541 = vpop.permute.xlu0 %540
        %v543 = vadd.f32 %v541, 0.0
        %s544 = scalar_lea.vmem [#allocation6], 12
        %v545 = vld [vmem:[%s544] sm:$0xf]
        %547 = vrot.lane.b32.xlu0 %v535, 126
        %v548 = vpop.permute.xlu0 %547
        %v550 = vsel %vm281, %v545, 0
        %v552 = vsel %vm285, %v548, 0
        %554 = vmatprep.subr.mxu0 0.0
        %555 = vmatpush1.msra.mxu0 %v552
        %556 = vmatprep.subr.mxu0 0.0
        %557 = vmatpush1.msra.mxu0 0.0
        %558 = vmatprep.subr.mxu0 0.0
        %559 = vmatpush1.msra.mxu0 0.0
        %560 = vmatprep.subr.mxu0 0.0
        %561 = vmatpush1.msra.mxu0 0.0
        %562 = vmatprep.subr.mxu0 0.0
        %563 = vmatpush1.msra.mxu0 0.0
        %564 = vmatprep.subr.mxu0 0.0
        %565 = vmatpush1.msra.mxu0 0.0
        %566 = vmatprep.subr.mxu0 0.0
        %567 = vmatpush1.msra.mxu0 0.0
        %568 = vmatprep.subr.mxu0 0.0
        %569 = vmatpush1.msra.mxu0 0.0
        %570 = vmatprep.subr.mxu0 0.0
        %571 = vmatpush1.msra.mxu0 0.0
        %572 = vmatprep.subr.mxu0 0.0
        %573 = vmatpush1.msra.mxu0 0.0
        %574 = vmatprep.subr.mxu0 0.0
        %575 = vmatpush1.msra.mxu0 0.0
        %576 = vmatprep.subr.mxu0 0.0
        %577 = vmatpush1.msra.mxu0 0.0
        %578 = vmatprep.subr.mxu0 0.0
        %579 = vmatpush1.msra.mxu0 0.0
        %580 = vmatprep.subr.mxu0 0.0
        %581 = vmatpush1.msra.mxu0 0.0
        %582 = vmatprep.subr.mxu0 0.0
        %583 = vmatpush1.msra.mxu0 0.0
        %584 = vmatprep.subr.mxu0 0.0
        %585 = vmatpush1.msra.mxu0 0.0
        %586 = vmatprep.subr.mxu0 0.0
        %587 = vmatpush1.msra.mxu0 0.0
        %588 = vmatprep.subr.mxu0 0.0
        %589 = vmatpush1.msra.mxu0 0.0
        %590 = vmatprep.subr.mxu0 0.0
        %591 = vmatpush1.msra.mxu0 0.0
        %592 = vmatprep.subr.mxu0 0.0
        %593 = vmatpush1.msra.mxu0 0.0
        %594 = vmatprep.subr.mxu0 0.0
        %595 = vmatpush1.msra.mxu0 0.0
        %596 = vmatprep.subr.mxu0 0.0
        %597 = vmatpush1.msra.mxu0 0.0
        %598 = vmatprep.subr.mxu0 0.0
        %599 = vmatpush1.msra.mxu0 0.0
        %600 = vmatprep.subr.mxu0 0.0
        %601 = vmatpush1.msra.mxu0 0.0
        %602 = vmatprep.subr.mxu0 0.0
        %603 = vmatpush1.msra.mxu0 0.0
        %604 = vmatprep.subr.mxu0 0.0
        %605 = vmatpush1.msra.mxu0 0.0
        %606 = vmatprep.subr.mxu0 0.0
        %607 = vmatpush1.msra.mxu0 0.0
        %608 = vmatprep.subr.mxu0 0.0
        %609 = vmatpush1.msra.mxu0 0.0
        %610 = vmatprep.subr.mxu0 0.0
        %611 = vmatpush1.msra.mxu0 0.0
        %612 = vmatprep.subr.mxu0 0.0
        %613 = vmatpush1.msra.mxu0 0.0
        %614 = vmatprep.subr.mxu0 0.0
        %615 = vmatpush1.msra.mxu0 0.0
        %616 = vmatprep.subr.mxu0 0.0
        %617 = vmatpush1.msra.mxu0 0.0
        %618 = vmatprep.mubr.f32.mxu0 0.0
        %619 = vmatmul.mubr.f32.gmra.mrb[0].mxu0 %v550
        %v620 = vpop.f32.mrb[0].mxu0
        %v621 = vadd.f32 0.0, %v620
        %v622 = vpop.f32.mrb[0].mxu0
        %623 = vdwg.mxu0
        %v624 = vadd.f32 %v543, %v621
        %s625 = scalar_lea.vmem [#allocation6], 16
        %v626 = vld [vmem:[%s625] sm:$0xf]
        %627 = vrot.lane.b32.xlu0 %v535, 124
        %v628 = vpop.permute.xlu0 %627
        %v630 = vsel %vm281, %v626, 0
        %v632 = vsel %vm285, %v628, 0
        %634 = vmatprep.subr.mxu0 0.0
        %635 = vmatpush1.msra.mxu0 %v632
        %636 = vmatprep.subr.mxu0 0.0
        %637 = vmatpush1.msra.mxu0 0.0
        %638 = vmatprep.subr.mxu0 0.0
        %639 = vmatpush1.msra.mxu0 0.0
        %640 = vmatprep.subr.mxu0 0.0
        %641 = vmatpush1.msra.mxu0 0.0
        %642 = vmatprep.subr.mxu0 0.0
        %643 = vmatpush1.msra.mxu0 0.0
        %644 = vmatprep.subr.mxu0 0.0
        %645 = vmatpush1.msra.mxu0 0.0
        %646 = vmatprep.subr.mxu0 0.0
        %647 = vmatpush1.msra.mxu0 0.0
        %648 = vmatprep.subr.mxu0 0.0
        %649 = vmatpush1.msra.mxu0 0.0
        %650 = vmatprep.subr.mxu0 0.0
        %651 = vmatpush1.msra.mxu0 0.0
        %652 = vmatprep.subr.mxu0 0.0
        %653 = vmatpush1.msra.mxu0 0.0
        %654 = vmatprep.subr.mxu0 0.0
        %655 = vmatpush1.msra.mxu0 0.0
        %656 = vmatprep.subr.mxu0 0.0
        %657 = vmatpush1.msra.mxu0 0.0
        %658 = vmatprep.subr.mxu0 0.0
        %659 = vmatpush1.msra.mxu0 0.0
        %660 = vmatprep.subr.mxu0 0.0
        %661 = vmatpush1.msra.mxu0 0.0
        %662 = vmatprep.subr.mxu0 0.0
        %663 = vmatpush1.msra.mxu0 0.0
        %664 = vmatprep.subr.mxu0 0.0
        %665 = vmatpush1.msra.mxu0 0.0
        %666 = vmatprep.subr.mxu0 0.0
        %667 = vmatpush1.msra.mxu0 0.0
        %668 = vmatprep.subr.mxu0 0.0
        %669 = vmatpush1.msra.mxu0 0.0
        %670 = vmatprep.subr.mxu0 0.0
        %671 = vmatpush1.msra.mxu0 0.0
        %672 = vmatprep.subr.mxu0 0.0
        %673 = vmatpush1.msra.mxu0 0.0
        %674 = vmatprep.subr.mxu0 0.0
        %675 = vmatpush1.msra.mxu0 0.0
        %676 = vmatprep.subr.mxu0 0.0
        %677 = vmatpush1.msra.mxu0 0.0
        %678 = vmatprep.subr.mxu0 0.0
        %679 = vmatpush1.msra.mxu0 0.0
        %680 = vmatprep.subr.mxu0 0.0
        %681 = vmatpush1.msra.mxu0 0.0
        %682 = vmatprep.subr.mxu0 0.0
        %683 = vmatpush1.msra.mxu0 0.0
        %684 = vmatprep.subr.mxu0 0.0
        %685 = vmatpush1.msra.mxu0 0.0
        %686 = vmatprep.subr.mxu0 0.0
        %687 = vmatpush1.msra.mxu0 0.0
        %688 = vmatprep.subr.mxu0 0.0
        %689 = vmatpush1.msra.mxu0 0.0
        %690 = vmatprep.subr.mxu0 0.0
        %691 = vmatpush1.msra.mxu0 0.0
        %692 = vmatprep.subr.mxu0 0.0
        %693 = vmatpush1.msra.mxu0 0.0
        %694 = vmatprep.subr.mxu0 0.0
        %695 = vmatpush1.msra.mxu0 0.0
        %696 = vmatprep.subr.mxu0 0.0
        %697 = vmatpush1.msra.mxu0 0.0
        %698 = vmatprep.mubr.f32.mxu0 0.0
        %699 = vmatmul.mubr.f32.gmra.mrb[0].mxu0 %v630
        %v700 = vpop.f32.mrb[0].mxu0
        %v701 = vadd.f32 0.0, %v700
        %v702 = vpop.f32.mrb[0].mxu0
        %703 = vdwg.mxu0
        %v704 = vadd.f32 %v624, %v701
        %s705 = scalar_lea.vmem [#allocation6], 20
        %v706 = vld [vmem:[%s705] sm:$0xf]
        %707 = vrot.lane.b32.xlu0 %v535, 122
        %v708 = vpop.permute.xlu0 %707
        %v710 = vsel %vm281, %v706, 0
        %v712 = vsel %vm285, %v708, 0
        %714 = vmatprep.subr.mxu0 0.0
        %715 = vmatpush1.msra.mxu0 %v712
        %716 = vmatprep.subr.mxu0 0.0
        %717 = vmatpush1.msra.mxu0 0.0
        %718 = vmatprep.subr.mxu0 0.0
        %719 = vmatpush1.msra.mxu0 0.0
        %720 = vmatprep.subr.mxu0 0.0
        %721 = vmatpush1.msra.mxu0 0.0
        %722 = vmatprep.subr.mxu0 0.0
        %723 = vmatpush1.msra.mxu0 0.0
        %724 = vmatprep.subr.mxu0 0.0
        %725 = vmatpush1.msra.mxu0 0.0
        %726 = vmatprep.subr.mxu0 0.0
        %727 = vmatpush1.msra.mxu0 0.0
        %728 = vmatprep.subr.mxu0 0.0
        %729 = vmatpush1.msra.mxu0 0.0
        %730 = vmatprep.subr.mxu0 0.0
        %731 = vmatpush1.msra.mxu0 0.0
        %732 = vmatprep.subr.mxu0 0.0
        %733 = vmatpush1.msra.mxu0 0.0
        %734 = vmatprep.subr.mxu0 0.0
        %735 = vmatpush1.msra.mxu0 0.0
        %736 = vmatprep.subr.mxu0 0.0
        %737 = vmatpush1.msra.mxu0 0.0
        %738 = vmatprep.subr.mxu0 0.0
        %739 = vmatpush1.msra.mxu0 0.0
        %740 = vmatprep.subr.mxu0 0.0
        %741 = vmatpush1.msra.mxu0 0.0
        %742 = vmatprep.subr.mxu0 0.0
        %743 = vmatpush1.msra.mxu0 0.0
        %744 = vmatprep.subr.mxu0 0.0
        %745 = vmatpush1.msra.mxu0 0.0
        %746 = vmatprep.subr.mxu0 0.0
        %747 = vmatpush1.msra.mxu0 0.0
        %748 = vmatprep.subr.mxu0 0.0
        %749 = vmatpush1.msra.mxu0 0.0
        %750 = vmatprep.subr.mxu0 0.0
        %751 = vmatpush1.msra.mxu0 0.0
        %752 = vmatprep.subr.mxu0 0.0
        %753 = vmatpush1.msra.mxu0 0.0
        %754 = vmatprep.subr.mxu0 0.0
        %755 = vmatpush1.msra.mxu0 0.0
        %756 = vmatprep.subr.mxu0 0.0
        %757 = vmatpush1.msra.mxu0 0.0
        %758 = vmatprep.subr.mxu0 0.0
        %759 = vmatpush1.msra.mxu0 0.0
        %760 = vmatprep.subr.mxu0 0.0
        %761 = vmatpush1.msra.mxu0 0.0
        %762 = vmatprep.subr.mxu0 0.0
        %763 = vmatpush1.msra.mxu0 0.0
        %764 = vmatprep.subr.mxu0 0.0
        %765 = vmatpush1.msra.mxu0 0.0
        %766 = vmatprep.subr.mxu0 0.0
        %767 = vmatpush1.msra.mxu0 0.0
        %768 = vmatprep.subr.mxu0 0.0
        %769 = vmatpush1.msra.mxu0 0.0
        %770 = vmatprep.subr.mxu0 0.0
        %771 = vmatpush1.msra.mxu0 0.0
        %772 = vmatprep.subr.mxu0 0.0
        %773 = vmatpush1.msra.mxu0 0.0
        %774 = vmatprep.subr.mxu0 0.0
        %775 = vmatpush1.msra.mxu0 0.0
        %776 = vmatprep.subr.mxu0 0.0
        %777 = vmatpush1.msra.mxu0 0.0
        %778 = vmatprep.mubr.f32.mxu0 0.0
        %779 = vmatmul.mubr.f32.gmra.mrb[0].mxu0 %v710
        %v780 = vpop.f32.mrb[0].mxu0
        %v781 = vadd.f32 0.0, %v780
        %v782 = vpop.f32.mrb[0].mxu0
        %783 = vdwg.mxu0
        %v784 = vadd.f32 %v704, %v781
        %v785 = vmul.f32 %v784, %v523
        %787 = vrot.lane.b32.xlu0 %v785, 4
        %v788 = vpop.permute.xlu0 %787
        %v790 = vadd.f32 %v532, %v788
        %791 = vst.msk [vmem:[#allocation2] sm:$0xf] %vm264, %v790
        %v792 = vld [vmem:[#allocation2] sm:$0xf]
        %vm793 = vcmp.ge.f32.partialorder %v792, 0.0
        %v794 = vmul.f32 %v792, 0.1
        %v795 = vsel %vm793, %v792, %v794
        %s796 = scalar_lea.vmem [#allocation8], 8
        %v797 = vld [vmem:[%s796] sm:$0xf]
        %799 = vset.pattern.permute.xlu0 0
        %800 = vperm.xlu0 %799, %v797
        %v801 = vpop.permute.xlu0 %800
        %v803 = vadd.f32 %v801, 0.0
        %s804 = scalar_lea.vmem [#allocation6], 24
        %v805 = vld [vmem:[%s804] sm:$0xf]
        %v807 = vsel %vm281, %v805, 0
        %v810 = vsel %vm285, %v795, 0
        %812 = vmatprep.subr.mxu0 0.0
        %813 = vmatpush1.msra.mxu0 %v810
        %814 = vmatprep.subr.mxu0 0.0
        %815 = vmatpush1.msra.mxu0 0.0
        %816 = vmatprep.subr.mxu0 0.0
        %817 = vmatpush1.msra.mxu0 0.0
        %818 = vmatprep.subr.mxu0 0.0
        %819 = vmatpush1.msra.mxu0 0.0
        %820 = vmatprep.subr.mxu0 0.0
        %821 = vmatpush1.msra.mxu0 0.0
        %822 = vmatprep.subr.mxu0 0.0
        %823 = vmatpush1.msra.mxu0 0.0
        %824 = vmatprep.subr.mxu0 0.0
        %825 = vmatpush1.msra.mxu0 0.0
        %826 = vmatprep.subr.mxu0 0.0
        %827 = vmatpush1.msra.mxu0 0.0
        %828 = vmatprep.subr.mxu0 0.0
        %829 = vmatpush1.msra.mxu0 0.0
        %830 = vmatprep.subr.mxu0 0.0
        %831 = vmatpush1.msra.mxu0 0.0
        %832 = vmatprep.subr.mxu0 0.0
        %833 = vmatpush1.msra.mxu0 0.0
        %834 = vmatprep.subr.mxu0 0.0
        %835 = vmatpush1.msra.mxu0 0.0
        %836 = vmatprep.subr.mxu0 0.0
        %837 = vmatpush1.msra.mxu0 0.0
        %838 = vmatprep.subr.mxu0 0.0
        %839 = vmatpush1.msra.mxu0 0.0
        %840 = vmatprep.subr.mxu0 0.0
        %841 = vmatpush1.msra.mxu0 0.0
        %842 = vmatprep.subr.mxu0 0.0
        %843 = vmatpush1.msra.mxu0 0.0
        %844 = vmatprep.subr.mxu0 0.0
        %845 = vmatpush1.msra.mxu0 0.0
        %846 = vmatprep.subr.mxu0 0.0
        %847 = vmatpush1.msra.mxu0 0.0
        %848 = vmatprep.subr.mxu0 0.0
        %849 = vmatpush1.msra.mxu0 0.0
        %850 = vmatprep.subr.mxu0 0.0
        %851 = vmatpush1.msra.mxu0 0.0
        %852 = vmatprep.subr.mxu0 0.0
        %853 = vmatpush1.msra.mxu0 0.0
        %854 = vmatprep.subr.mxu0 0.0
        %855 = vmatpush1.msra.mxu0 0.0
        %856 = vmatprep.subr.mxu0 0.0
        %857 = vmatpush1.msra.mxu0 0.0
        %858 = vmatprep.subr.mxu0 0.0
        %859 = vmatpush1.msra.mxu0 0.0
        %860 = vmatprep.subr.mxu0 0.0
        %861 = vmatpush1.msra.mxu0 0.0
        %862 = vmatprep.subr.mxu0 0.0
        %863 = vmatpush1.msra.mxu0 0.0
        %864 = vmatprep.subr.mxu0 0.0
        %865 = vmatpush1.msra.mxu0 0.0
        %866 = vmatprep.subr.mxu0 0.0
        %867 = vmatpush1.msra.mxu0 0.0
        %868 = vmatprep.subr.mxu0 0.0
        %869 = vmatpush1.msra.mxu0 0.0
        %870 = vmatprep.subr.mxu0 0.0
        %871 = vmatpush1.msra.mxu0 0.0
        %872 = vmatprep.subr.mxu0 0.0
        %873 = vmatpush1.msra.mxu0 0.0
        %874 = vmatprep.subr.mxu0 0.0
        %875 = vmatpush1.msra.mxu0 0.0
        %876 = vmatprep.mubr.f32.mxu0 0.0
        %877 = vmatmul.mubr.f32.gmra.mrb[0].mxu0 %v807
        %v878 = vpop.f32.mrb[0].mxu0
        %v879 = vadd.f32 0.0, %v878
        %v880 = vpop.f32.mrb[0].mxu0
        %881 = vdwg.mxu0
        %v882 = vadd.f32 %v803, %v879
        %s883 = scalar_lea.vmem [#allocation6], 28
        %v884 = vld [vmem:[%s883] sm:$0xf]
        %885 = vrot.lane.b32.xlu0 %v795, 124
        %v886 = vpop.permute.xlu0 %885
        %v888 = vsel %vm281, %v884, 0
        %v890 = vsel %vm285, %v886, 0
        %892 = vmatprep.subr.mxu0 0.0
        %893 = vmatpush1.msra.mxu0 %v890
        %894 = vmatprep.subr.mxu0 0.0
        %895 = vmatpush1.msra.mxu0 0.0
        %896 = vmatprep.subr.mxu0 0.0
        %897 = vmatpush1.msra.mxu0 0.0
        %898 = vmatprep.subr.mxu0 0.0
        %899 = vmatpush1.msra.mxu0 0.0
        %900 = vmatprep.subr.mxu0 0.0
        %901 = vmatpush1.msra.mxu0 0.0
        %902 = vmatprep.subr.mxu0 0.0
        %903 = vmatpush1.msra.mxu0 0.0
        %904 = vmatprep.subr.mxu0 0.0
        %905 = vmatpush1.msra.mxu0 0.0
        %906 = vmatprep.subr.mxu0 0.0
        %907 = vmatpush1.msra.mxu0 0.0
        %908 = vmatprep.subr.mxu0 0.0
        %909 = vmatpush1.msra.mxu0 0.0
        %910 = vmatprep.subr.mxu0 0.0
        %911 = vmatpush1.msra.mxu0 0.0
        %912 = vmatprep.subr.mxu0 0.0
        %913 = vmatpush1.msra.mxu0 0.0
        %914 = vmatprep.subr.mxu0 0.0
        %915 = vmatpush1.msra.mxu0 0.0
        %916 = vmatprep.subr.mxu0 0.0
        %917 = vmatpush1.msra.mxu0 0.0
        %918 = vmatprep.subr.mxu0 0.0
        %919 = vmatpush1.msra.mxu0 0.0
        %920 = vmatprep.subr.mxu0 0.0
        %921 = vmatpush1.msra.mxu0 0.0
        %922 = vmatprep.subr.mxu0 0.0
        %923 = vmatpush1.msra.mxu0 0.0
        %924 = vmatprep.subr.mxu0 0.0
        %925 = vmatpush1.msra.mxu0 0.0
        %926 = vmatprep.subr.mxu0 0.0
        %927 = vmatpush1.msra.mxu0 0.0
        %928 = vmatprep.subr.mxu0 0.0
        %929 = vmatpush1.msra.mxu0 0.0
        %930 = vmatprep.subr.mxu0 0.0
        %931 = vmatpush1.msra.mxu0 0.0
        %932 = vmatprep.subr.mxu0 0.0
        %933 = vmatpush1.msra.mxu0 0.0
        %934 = vmatprep.subr.mxu0 0.0
        %935 = vmatpush1.msra.mxu0 0.0
        %936 = vmatprep.subr.mxu0 0.0
        %937 = vmatpush1.msra.mxu0 0.0
        %938 = vmatprep.subr.mxu0 0.0
        %939 = vmatpush1.msra.mxu0 0.0
        %940 = vmatprep.subr.mxu0 0.0
        %941 = vmatpush1.msra.mxu0 0.0
        %942 = vmatprep.subr.mxu0 0.0
        %943 = vmatpush1.msra.mxu0 0.0
        %944 = vmatprep.subr.mxu0 0.0
        %945 = vmatpush1.msra.mxu0 0.0
        %946 = vmatprep.subr.mxu0 0.0
        %947 = vmatpush1.msra.mxu0 0.0
        %948 = vmatprep.subr.mxu0 0.0
        %949 = vmatpush1.msra.mxu0 0.0
        %950 = vmatprep.subr.mxu0 0.0
        %951 = vmatpush1.msra.mxu0 0.0
        %952 = vmatprep.subr.mxu0 0.0
        %953 = vmatpush1.msra.mxu0 0.0
        %954 = vmatprep.subr.mxu0 0.0
        %955 = vmatpush1.msra.mxu0 0.0
        %956 = vmatprep.mubr.f32.mxu0 0.0
        %957 = vmatmul.mubr.f32.gmra.mrb[0].mxu0 %v888
        %v958 = vpop.f32.mrb[0].mxu0
        %v959 = vadd.f32 0.0, %v958
        %v960 = vpop.f32.mrb[0].mxu0
        %961 = vdwg.mxu0
        %v962 = vadd.f32 %v882, %v959
        %s963 = scalar_lea.vmem [#allocation6], 32
        %v964 = vld [vmem:[%s963] sm:$0xf]
        %965 = vrot.lane.b32.xlu0 %v795, 120
        %v966 = vpop.permute.xlu0 %965
        %v968 = vsel %vm281, %v964, 0
        %v970 = vsel %vm285, %v966, 0
        %972 = vmatprep.subr.mxu0 0.0
        %973 = vmatpush1.msra.mxu0 %v970
        %974 = vmatprep.subr.mxu0 0.0
        %975 = vmatpush1.msra.mxu0 0.0
        %976 = vmatprep.subr.mxu0 0.0
        %977 = vmatpush1.msra.mxu0 0.0
        %978 = vmatprep.subr.mxu0 0.0
        %979 = vmatpush1.msra.mxu0 0.0
        %980 = vmatprep.subr.mxu0 0.0
        %981 = vmatpush1.msra.mxu0 0.0
        %982 = vmatprep.subr.mxu0 0.0
        %983 = vmatpush1.msra.mxu0 0.0
        %984 = vmatprep.subr.mxu0 0.0
        %985 = vmatpush1.msra.mxu0 0.0
        %986 = vmatprep.subr.mxu0 0.0
        %987 = vmatpush1.msra.mxu0 0.0
        %988 = vmatprep.subr.mxu0 0.0
        %989 = vmatpush1.msra.mxu0 0.0
        %990 = vmatprep.subr.mxu0 0.0
        %991 = vmatpush1.msra.mxu0 0.0
        %992 = vmatprep.subr.mxu0 0.0
        %993 = vmatpush1.msra.mxu0 0.0
        %994 = vmatprep.subr.mxu0 0.0
        %995 = vmatpush1.msra.mxu0 0.0
        %996 = vmatprep.subr.mxu0 0.0
        %997 = vmatpush1.msra.mxu0 0.0
        %998 = vmatprep.subr.mxu0 0.0
        %999 = vmatpush1.msra.mxu0 0.0
        %1000 = vmatprep.subr.mxu0 0.0
        %1001 = vmatpush1.msra.mxu0 0.0
        %1002 = vmatprep.subr.mxu0 0.0
        %1003 = vmatpush1.msra.mxu0 0.0
        %1004 = vmatprep.subr.mxu0 0.0
        %1005 = vmatpush1.msra.mxu0 0.0
        %1006 = vmatprep.subr.mxu0 0.0
        %1007 = vmatpush1.msra.mxu0 0.0
        %1008 = vmatprep.subr.mxu0 0.0
        %1009 = vmatpush1.msra.mxu0 0.0
        %1010 = vmatprep.subr.mxu0 0.0
        %1011 = vmatpush1.msra.mxu0 0.0
        %1012 = vmatprep.subr.mxu0 0.0
        %1013 = vmatpush1.msra.mxu0 0.0
        %1014 = vmatprep.subr.mxu0 0.0
        %1015 = vmatpush1.msra.mxu0 0.0
        %1016 = vmatprep.subr.mxu0 0.0
        %1017 = vmatpush1.msra.mxu0 0.0
        %1018 = vmatprep.subr.mxu0 0.0
        %1019 = vmatpush1.msra.mxu0 0.0
        %1020 = vmatprep.subr.mxu0 0.0
        %1021 = vmatpush1.msra.mxu0 0.0
        %1022 = vmatprep.subr.mxu0 0.0
        %1023 = vmatpush1.msra.mxu0 0.0
        %1024 = vmatprep.subr.mxu0 0.0
        %1025 = vmatpush1.msra.mxu0 0.0
        %1026 = vmatprep.subr.mxu0 0.0
        %1027 = vmatpush1.msra.mxu0 0.0
        %1028 = vmatprep.subr.mxu0 0.0
        %1029 = vmatpush1.msra.mxu0 0.0
        %1030 = vmatprep.subr.mxu0 0.0
        %1031 = vmatpush1.msra.mxu0 0.0
        %1032 = vmatprep.subr.mxu0 0.0
        %1033 = vmatpush1.msra.mxu0 0.0
        %1034 = vmatprep.subr.mxu0 0.0
        %1035 = vmatpush1.msra.mxu0 0.0
        %1036 = vmatprep.mubr.f32.mxu0 0.0
        %1037 = vmatmul.mubr.f32.gmra.mrb[0].mxu0 %v968
        %v1038 = vpop.f32.mrb[0].mxu0
        %v1039 = vadd.f32 0.0, %v1038
        %v1040 = vpop.f32.mrb[0].mxu0
        %1041 = vdwg.mxu0
        %v1042 = vadd.f32 %v962, %v1039
        %v1043 = vmul.f32 %v1042, %v523
        %1045 = vrot.lane.b32.xlu0 %v1043, 4
        %v1046 = vpop.permute.xlu0 %1045
        %v1048 = vadd.f32 %v792, %v1046
        %1049 = vrot.lane.b32.xlu0 %v523, 4
        %v1050 = vpop.permute.xlu0 %1049
        %v1052 = vmul.f32 %v1048, %v1050
        %1054 = vrot.lane.b32.xlu0 %v1052, 124
        %v1055 = vpop.permute.xlu0 %1054
        %vm1057 = vcmask 125952
        %1058 = vst.msk [vmem:[%s252] sm:$0xf] %vm1057, %v1055
        %s1059 = sand.u32 %s124, 1
        %s1060 = scalar_lea.sflag [#allocation5], %s1059
        %s1061 = sand.u32 %s124, 1
        %s1062 = smul.addr %s1061, 4
        %s1063 = scalar_lea.vmem [#allocation9], %s1062
        // Predicated region
        $region49: #{resblock_pallas.1} parent=35 // pred_check
          %p1064 = pneg %p134
        $region50: #{resblock_pallas.1} parent=35 // pred_check_branch
          %1066 = sbr.rel (%p1064) target = $region52
        $region51: #{resblock_pallas.1} parent=35 // pred_region
          %s1068 = ssub.s32 64, 64
          %1069 = vsyncadd %s1060, %s1068
          %s1070 = smul.addr %s22, 64
          %s1071 = scalar_lea.hbm %s4, %s1070
          %s1073 = sshll.u32 %s1063, 4
          %s1074 = int_to_ptr.vmem [resolvable:$true] %s1073
          %1076 = dma.vmem_to_hbm [thread:$0]  %s1074, 64, %s1071, %s1060
        $region52: #{resblock_pallas.1} parent=35 // pred_fallthru
          _
      $region36: #{resblock_pallas.1} parent=5 // pred_fallthru
        _
      %p1077 = scmp.le.s32.totalorder 2, %s17
      // Predicated region
      $region53: #{resblock_pallas.1} parent=5 // pred_check
        %p1078 = pneg %p1077
      $region54: #{resblock_pallas.1} parent=5 // pred_check_branch
        %1080 = sbr.rel (%p1078) target = $region56
      $region55: #{resblock_pallas.1} parent=5 // pred_region
        %s1081 = ssub.s32 %s17, 2
        // Predicated region
        $region57: #{resblock_pallas.1} parent=55 // pred_check
          %p1082 = pneg %p140
        $region58: #{resblock_pallas.1} parent=55 // pred_check_branch
          %1084 = sbr.rel (%p1082) target = $region60
        $region59: #{resblock_pallas.1} parent=55 // pred_region
          %s1085 = sand.u32 %s125, 1
          %s1086 = scalar_lea.sflag [#allocation5], %s1085
          %s1087 = sand.u32 %s125, 1
          %s1088 = smul.addr %s1087, 4
          %s1089 = scalar_lea.vmem [#allocation9], %s1088
          %1090 = dma.done %s1086, 64
        $region60: #{resblock_pallas.1} parent=55 // pred_fallthru
          _
      $region56: #{resblock_pallas.1} parent=5 // pred_fallthru
        _
    $region6: #{resblock_pallas.1} parent=1 // loop_footer
      %s21 = sadd.s32 1, %s17
    $region7: #{resblock_pallas.1} parent=1 // loop_footer_branch
      %16 = sbr.rel target = $region3
    $region8: #{resblock_pallas.1} parent=1 // loop_exit
      _
    %1091 = vsyncpa [#allocation4], 1
    %s1092 = scalar_lea.sflag [#allocation4], 1
    %1093 = vsyncpa %s1092, 1
    %1094 = vsyncpa [#allocation7], 1
    %1095 = vsyncpa [#allocation5], 1
    %s1096 = scalar_lea.sflag [#allocation5], 1
    %1097 = vsyncpa %s1096, 1

</llo_original>
